<compile_context>
chip_gen: v6e
topology: v6e:2x2x1
jax: 0.10.0
libtpu: 0.0.40
codegen_flags: <defaults>
</compile_context>

<pallas_src>
import jax
import jax.numpy as jnp
from jax.experimental import pallas as pl
from jax.experimental.pallas import tpu as pltpu


# ----------------------------------------------------------------------------- helpers
def _round_up(x, m):
    return ((x + m - 1) // m) * m


def _pick_mult8_block(n, max_block):
    """Largest multiple-of-8 divisor of n that is <= max_block (n itself if it fits)."""
    if n <= max_block:
        return n
    best, c = 8, 8
    while c <= max_block:
        if n % c == 0:
            best = c
        c += 8
    return best


def _pick_lane_block(n, max_block=512):
    """Largest multiple-of-128 divisor of n that is <= max_block (n itself if it fits)."""
    if n <= max_block:
        return n
    best, c = 128, 128
    while c <= max_block:
        if n % c == 0:
            best = c
        c += 128
    return best


def _vmem_cap_bytes():
    """Generation-aware VMEM ceiling: ~75% of physical (v5e/v6e: 128 MiB, v7x: 64 MiB)."""
    try:
        phys = int(pltpu.get_tpu_info().vmem_capacity_bytes)
    except Exception:  # pragma: no cover - conservative fallback
        phys = 64 * 1024 * 1024
    return (phys * 3) // 4


def _vmem_limit_bytes(need_bytes):
    need = (int(need_bytes) * 3) // 2 + (4 << 20)
    return max(min(need, _vmem_cap_bytes()), 32 << 20)


# Single-buffer grid-invariant operands only when it frees a meaningful amount of VMEM
# (large W_hh at realistic H); tiny constants keep the default double buffer.
_SINGLE_BUFFER_MIN_BYTES = 2 * 1024 * 1024


def _const_spec(block_shape, index_map, nbytes):
    if nbytes >= _SINGLE_BUFFER_MIN_BYTES:
        return pl.BlockSpec(block_shape, index_map, pipeline_mode=pl.Buffered(1))
    return pl.BlockSpec(block_shape, index_map)


# ----------------------------------------------------------------------------- kernels
def _input_proj_kernel(x_ref, w_ref, b_ref, o_ref):
    """GI tile = X_tile @ W_ih_tile + b_ih_tile (f32 accumulation, cast on store)."""
    acc = jnp.dot(x_ref[...], w_ref[...], preferred_element_type=jnp.float32)
    o_ref[...] = (acc + b_ref[...]).astype(o_ref.dtype)


def _gru_recurrent_kernel(gi_ref, w_hh_ref, bhn_ref, seq_ref, h_ref):
    """GRU recurrence over one (batch block, time block).

    gi_ref  : (BT, BB, 3*Hp)  precomputed x_t @ W_ih + b_ih (+ folded b_hh[r,z])
    w_hh_ref: (Hp, 3*Hp)      hidden->hidden weights, gates [r|z|n], lane-aligned
    bhn_ref : (1, Hp)         n-gate hidden bias (must stay inside the recurrence)
    seq_ref : (BT, BB, Hp)    per-step outputs h_t
    h_ref   : VMEM (BB, Hp)   recurrent state, persists across time-grid steps (f32)
    """
    block_t, batch_blk, _ = gi_ref.shape
    hid = w_hh_ref.shape[0]                       # padded H, multiple of 128

    @pl.when(pl.program_id(1) == 0)               # t == 0: PyTorch default h_0 = zeros
    def _():
        h_ref[...] = jnp.zeros_like(h_ref)

    # Hoisted out of the per-step loop: one weight load, one bias broadcast.
    w_hh = w_hh_ref[...]
    b_hn = jnp.broadcast_to(bhn_ref[...], (batch_blk, hid)).astype(jnp.float32)

    def step(i, h):
        gi = gi_ref[i].astype(jnp.float32)                          # (BB, 3Hp) f32
        gh = jnp.dot(h.astype(w_hh.dtype), w_hh,
                     preferred_element_type=jnp.float32)            # (BB, 3Hp) f32
        # Gate slices are lane-aligned (hid is a multiple of 128).
        r = jax.nn.sigmoid(gi[:, :hid] + gh[:, :hid])
        z = jax.nn.sigmoid(gi[:, hid:2 * hid] + gh[:, hid:2 * hid])
        n = jnp.tanh(gi[:, 2 * hid:] + r * (gh[:, 2 * hid:] + b_hn))
        h_new = n + z * (h - n)                                     # == (1-z)*n + z*h
        seq_ref[i] = h_new.astype(seq_ref.dtype)
        return h_new

    h_ref[...] = jax.lax.fori_loop(0, block_t, step, h_ref[...], unroll=4)


# ----------------------------------------------------------------------------- wrappers
def gru_input_projection(x2d, w_ih, b_ih, out_dtype):
    """x2d: (Tp*Bp, Din) -> GI: (Tp*Bp, 3*Hp). Tiled over rows and the 3*Hp (N) axis."""
    rows, d_in = x2d.shape
    three_h = w_ih.shape[1]
    rb = _pick_mult8_block(rows, 1024)
    tn = _pick_lane_block(three_h, 512)
    need = (2 * rb * d_in * x2d.dtype.itemsize
            + 2 * d_in * tn * w_ih.dtype.itemsize
            + 2 * tn * 4
            + 2 * rb * tn * jnp.dtype(out_dtype).itemsize)
    return pl.pallas_call(
        _input_proj_kernel,
        out_shape=jax.ShapeDtypeStruct((rows, three_h), out_dtype),
        grid_spec=pltpu.PrefetchScalarGridSpec(
            num_scalar_prefetch=0,
            grid=(rows // rb, three_h // tn),
            in_specs=[
                pl.BlockSpec((rb, d_in), lambda i, j: (i, 0)),
                pl.BlockSpec((d_in, tn), lambda i, j: (0, j)),
                pl.BlockSpec((1, tn), lambda i, j: (0, j)),
            ],
            out_specs=pl.BlockSpec((rb, tn), lambda i, j: (i, j)),
        ),
        compiler_params=pltpu.CompilerParams(
            dimension_semantics=("parallel", "parallel"),
            vmem_limit_bytes=_vmem_limit_bytes(need)),
    )(x2d, w_ih, b_ih)


def gru_recurrence(gi, w_hh, b_hn, *, bt, out_dtype):
    """gi: (Tp, Bp, 3*Hp) -> seq: (Tp, Bp, Hp). Batch axis parallel, time axis sequential."""
    t_pad, b_padded, three_h = gi.shape
    hid_pad = w_hh.shape[0]
    bb = _pick_mult8_block(b_padded, 256)          # batch blocks -> v7x 2nd TC can help
    w_bytes = hid_pad * three_h * w_hh.dtype.itemsize
    need = (2 * bt * bb * three_h * gi.dtype.itemsize
            + 2 * bt * bb * hid_pad * jnp.dtype(out_dtype).itemsize
            + 2 * w_bytes + 2 * hid_pad * 4
            + bb * hid_pad * 4)
    return pl.pallas_call(
        _gru_recurrent_kernel,
        out_shape=jax.ShapeDtypeStruct((t_pad, b_padded, hid_pad), out_dtype),
        grid_spec=pltpu.PrefetchScalarGridSpec(
            num_scalar_prefetch=0,
            grid=(b_padded // bb, t_pad // bt),
            in_specs=[
                pl.BlockSpec((bt, bb, three_h), lambda b, t: (t, b, 0)),
                _const_spec((hid_pad, three_h), lambda b, t: (0, 0), w_bytes),
                _const_spec((1, hid_pad), lambda b, t: (0, 0), hid_pad * 4),
            ],
            out_specs=pl.BlockSpec((bt, bb, hid_pad), lambda b, t: (t, b, 0)),
            scratch_shapes=[pltpu.VMEM((bb, hid_pad), jnp.float32)],
        ),
        compiler_params=pltpu.CompilerParams(
            dimension_semantics=("parallel", "arbitrary"),
            vmem_limit_bytes=_vmem_limit_bytes(need)),
    )(gi, w_hh, b_hn)


def gru_layer_pallas(x, w_ih, w_hh, b_ih, b_hn, *, bt, out_dtype):
    """One GRU layer on padded data. x: (Tp, Bp, Din_p) -> seq: (Tp, Bp, Hp)."""
    t_pad, b_padded, d_in_pad = x.shape
    hid_pad = w_hh.shape[0]
    gi = gru_input_projection(x.reshape(t_pad * b_padded, d_in_pad), w_ih, b_ih, out_dtype)
    gi = gi.reshape(t_pad, b_padded, 3 * hid_pad)
    return gru_recurrence(gi, w_hh, b_hn, bt=bt, out_dtype=out_dtype)


# ----------------------------------------------------------------------------- weight prep
def _pad_gate_cols(a, hid, hid_pad):
    """(..., 3*hid) -> (..., 3*hid_pad), zero-padding each [r|z|n] gate block."""
    lead = a.shape[:-1]
    a3 = a.reshape(*lead, 3, hid)
    a3 = jnp.pad(a3, [(0, 0)] * len(lead) + [(0, 0), (0, hid_pad - hid)])
    return a3.reshape(*lead, 3 * hid_pad)


def _prep_layer(layer, d_in, d_in_pad, hid, hid_pad, matmul_dtype):
    """Pad gate blocks to Hp, fold r/z hidden biases into the input bias, cast weights."""
    w_ih, w_hh = layer["w_ih"], layer["w_hh"]
    b_ih, b_hh = layer["b_ih"], layer["b_hh"]
    b_hh_r, b_hh_z, b_hh_n = (b_hh[:, :hid], b_hh[:, hid:2 * hid], b_hh[:, 2 * hid:])
    b_ih_eff = b_ih + jnp.concatenate(
        [b_hh_r, b_hh_z, jnp.zeros_like(b_hh_n)], axis=1)          # fold r/z biases
    w_ih_p = jnp.pad(_pad_gate_cols(w_ih, hid, hid_pad), ((0, d_in_pad - d_in), (0, 0)))
    w_hh_p = jnp.pad(_pad_gate_cols(w_hh, hid, hid_pad), ((0, hid_pad - hid), (0, 0)))
    b_ih_p = _pad_gate_cols(b_ih_eff, hid, hid_pad).astype(jnp.float32)      # (1, 3Hp)
    b_hn_p = jnp.pad(b_hh_n, ((0, 0), (0, hid_pad - hid))).astype(jnp.float32)  # (1, Hp)
    return (w_ih_p.astype(matmul_dtype), w_hh_p.astype(matmul_dtype), b_ih_p, b_hn_p)


# ----------------------------------------------------------------------------- params
def init_params(key, vocab_size, emb_dim, hid_dim, n_layers):
    keys = jax.random.split(key, 1 + 4 * n_layers)
    params = {"embedding": jax.random.normal(keys[0], (vocab_size, emb_dim), jnp.float32)}
    layers = []
    bound = 1.0 / float(hid_dim) ** 0.5
    for l in range(n_layers):
        d_in = emb_dim if l == 0 else hid_dim
        k_wi, k_wh, k_bi, k_bh = keys[1 + 4 * l: 1 + 4 * (l + 1)]
        # Fused gate layout [r | z | n] along the 3H axis, U(-1/sqrt(H), 1/sqrt(H)) init
        # matching PyTorch nn.GRU defaults.
        layers.append({
            "w_ih": jax.random.uniform(k_wi, (d_in, 3 * hid_dim), jnp.float32, -bound, bound),
            "w_hh": jax.random.uniform(k_wh, (hid_dim, 3 * hid_dim), jnp.float32, -bound, bound),
            "b_ih": jax.random.uniform(k_bi, (1, 3 * hid_dim), jnp.float32, -bound, bound),
            "b_hh": jax.random.uniform(k_bh, (1, 3 * hid_dim), jnp.float32, -bound, bound),
        })
    params["layers"] = layers
    return params


# ----------------------------------------------------------------------------- forward
def gru_encoder_forward(tokens, params, *, matmul_dtype=jnp.float32):
    """tokens: (T, B) int32 -> (seq: (T, B, H) f32, h_n: (n_layers, B, H) f32)."""
    t_len, batch = tokens.shape
    emb = params["embedding"]
    emb_dim = emb.shape[1]
    hid = params["layers"][0]["w_hh"].shape[0]

    # Embedding lookup (gather) kept as plain JAX glue; the GRU hot path is Pallas.
    x = jnp.take(emb, tokens, axis=0)                     # (T, B, E) f32
    # Dropout (embedding + between GRU layers) is identity in eval mode.
    # TODO(synk): training-mode dropout (embedding + inter-layer) not implemented.

    hid_pad = _round_up(hid, 128)                         # lane-aligned gate blocks
    bt = 16 if t_len > 8 else 8                           # time block
    t_pad = _round_up(t_len, bt)
    b_pad = _round_up(batch, 8)                           # sublane-aligned batch

    x = jnp.pad(x, ((0, t_pad - t_len), (0, b_pad - batch), (0, 0)))
    layer_in = x.astype(matmul_dtype)

    h_ns = []
    d_in, d_in_pad = emb_dim, emb_dim
    for layer in params["layers"]:
        w_ih_p, w_hh_p, b_ih_p, b_hn_p = _prep_layer(
            layer, d_in, d_in_pad, hid, hid_pad, matmul_dtype)
        seq = gru_layer_pallas(layer_in, w_ih_p, w_hh_p, b_ih_p, b_hn_p,
                               bt=bt, out_dtype=matmul_dtype)
        h_ns.append(seq[t_len - 1, :batch, :hid].astype(jnp.float32))  # h_n = last real step
        layer_in = seq                                    # padded lanes stay exactly 0
        d_in, d_in_pad = hid, hid_pad

    seq_out = layer_in[:t_len, :batch, :hid].astype(jnp.float32)
    return seq_out, jnp.stack(h_ns, axis=0)


# ----------------------------------------------------------------------------- reference
def _gru_layer_ref(x, w_ih, w_hh, b_ih, b_hh):
    hid = w_hh.shape[0]
    batch = x.shape[1]

    def step(h, x_t):
        gi = x_t @ w_ih + b_ih
        gh = h @ w_hh + b_hh
        r = jax.nn.sigmoid(gi[:, :hid] + gh[:, :hid])
        z = jax.nn.sigmoid(gi[:, hid:2 * hid] + gh[:, hid:2 * hid])
        n = jnp.tanh(gi[:, 2 * hid:] + r * gh[:, 2 * hid:])
        h_new = (1.0 - z) * n + z * h
        return h_new, h_new

    h0 = jnp.zeros((batch, hid), jnp.float32)
    hn, seq = jax.lax.scan(step, h0, x)
    return seq, hn


# ----------------------------------------------------------------------------- main
if __name__ == "__main__":
    vocab_size, emb_dim, hid_dim, n_layers = 50, 16, 32, 2
    seq_len, batch = 8, 2

    key = jax.random.PRNGKey(0)
    k_tok, k_par = jax.random.split(key)
    tokens = jax.random.randint(k_tok, (seq_len, batch), 0, vocab_size, jnp.int32)
    params = init_params(k_par, vocab_size, emb_dim, hid_dim, n_layers)

    # f32 path (tight correctness check)
    seq_out, h_n = gru_encoder_forward(tokens, params)
    seq_out = jax.block_until_ready(seq_out)
    h_n = jax.block_until_ready(h_n)
    assert seq_out.shape == (seq_len, batch, hid_dim)
    assert h_n.shape == (n_layers, batch, hid_dim)

    # pure-JAX reference
    x_ref = jnp.take(params["embedding"], tokens, axis=0)
    hns_ref = []
    for layer in params["layers"]:
        x_ref, hn_ref = _gru_layer_ref(x_ref, layer["w_ih"], layer["w_hh"],
                                       layer["b_ih"], layer["b_hh"])
        hns_ref.append(hn_ref)
    hns_ref = jnp.stack(hns_ref, axis=0)
    assert jnp.allclose(seq_out, x_ref, atol=1e-5, rtol=1e-5)
    assert jnp.allclose(h_n, hns_ref, atol=1e-5, rtol=1e-5)

    # bf16 matmul/streaming path (bf16 GI + seq in HBM, f32 accumulation + f32 gate math)
    seq_bf, h_bf = gru_encoder_forward(tokens, params, matmul_dtype=jnp.bfloat16)
    seq_bf = jax.block_until_ready(seq_bf)
    h_bf = jax.block_until_ready(h_bf)
    assert jnp.allclose(seq_bf, x_ref, atol=1e-1)
    assert jnp.allclose(h_bf, hns_ref, atol=1e-1)

    print("KERNEL_OK")
</pallas_src>

<mosaic_0001>
module attributes {stable_mosaic.version = 11 : i64} {
  func.func @_input_proj_kernel(%arg0: i32, %arg1: i32, %arg2: memref<64x16xf32, #tpu.memory_space<vmem>>, %arg3: memref<16x384xf32, #tpu.memory_space<vmem>>, %arg4: memref<1x384xf32, #tpu.memory_space<vmem>>, %arg5: memref<64x384xf32, #tpu.memory_space<vmem>>) attributes {dimension_semantics = [#tpu.dimension_semantics<parallel>, #tpu.dimension_semantics<parallel>], iteration_bounds = array<i64: 1, 1>, scalar_prefetch = 0 : i64, scratch_operands = 0 : i64, tpu.core_type = #tpu.core_type<tc>, window_params = [{transform_indices = @transform_0, window_bounds = array<i64: 64, 16>}, {transform_indices = @transform_1, window_bounds = array<i64: 16, 384>}, {transform_indices = @transform_2, window_bounds = array<i64: 1, 384>}, {transform_indices = @transform_3, window_bounds = array<i64: 64, 384>}]} {
    %c0 = arith.constant 0 : index
    %c0_0 = arith.constant 0 : index
    %0 = vector.load %arg2[%c0, %c0_0] : memref<64x16xf32, #tpu.memory_space<vmem>>, vector<64x16xf32>
    %c0_1 = arith.constant 0 : index
    %c0_2 = arith.constant 0 : index
    %1 = vector.load %arg3[%c0_1, %c0_2] : memref<16x384xf32, #tpu.memory_space<vmem>>, vector<16x384xf32>
    %cst = arith.constant dense<0.000000e+00> : vector<64x384xf32>
    %2 = tpu.matmul %0, %1, %cst {dimension_numbers = #tpu.dot_dimension_numbers<[1], [0], [0], [1], [0, 0, 1, 1], [], []>} : vector<64x16xf32>, vector<16x384xf32>, vector<64x384xf32> -> vector<64x384xf32>
    %c0_3 = arith.constant 0 : index
    %c0_4 = arith.constant 0 : index
    %3 = vector.load %arg4[%c0_3, %c0_4] : memref<1x384xf32, #tpu.memory_space<vmem>>, vector<1x384xf32>
    %4 = vector.broadcast %3 : vector<1x384xf32> to vector<64x384xf32>
    %5 = arith.addf %2, %4 : vector<64x384xf32>
    %c0_5 = arith.constant 0 : index
    %c0_6 = arith.constant 0 : index
    %6 = vector.load %arg5[%c0_5, %c0_6] : memref<64x384xf32, #tpu.memory_space<vmem>>, vector<64x384xf32>
    tpu.vector_store %arg5[%c0_5, %c0_6], %5 {strides = array<i32>} : memref<64x384xf32, #tpu.memory_space<vmem>>, vector<64x384xf32>,
    return
  }
  func.func @transform_0(%arg0: i32, %arg1: i32) -> (i32, i32) {
    %c0_i32 = arith.constant 0 : i32
    %c0_i32_0 = arith.constant 0 : i32
    return %arg0, %c0_i32 : i32, i32
  }
  func.func @transform_1(%arg0: i32, %arg1: i32) -> (i32, i32) {
    %c0_i32 = arith.constant 0 : i32
    %c0_i32_0 = arith.constant 0 : i32
    return %c0_i32, %arg1 : i32, i32
  }
  func.func @transform_2(%arg0: i32, %arg1: i32) -> (i32, i32) {
    %c0_i32 = arith.constant 0 : i32
    %c0_i32_0 = arith.constant 0 : i32
    return %c0_i32, %arg1 : i32, i32
  }
  func.func @transform_3(%arg0: i32, %arg1: i32) -> (i32, i32) {
    %c0_i32 = arith.constant 0 : i32
    return %arg0, %arg1 : i32, i32
  }
}

</mosaic_0001>

<llo_original>
// kernel: tpu_custom_call.1
$region0: #{tpu_custom_call.1}
  #allocation0 [shape = 'u32[]', space=smem, size = 0x4, offset = 0x4, fixed_abs, tag = 'smem constant byte address 0x4 - core index']
  #allocation1 [shape = 'u32[144,128]{1,0:T(1,128)}', space=vmem, size = 0x12000, scoped, tag = 'internal scratch']
  %s0 = inlined_call_operand.vmem [shape: f32[64,16], index: 0, kind: input, shape index: {}]
  %s1 = inlined_call_operand.vmem [shape: f32[16,384], index: 1, kind: input, shape index: {}]
  %s2 = inlined_call_operand.vmem [shape: f32[1,384], index: 2, kind: input, shape index: {}]
  %s3 = inlined_call_operand.hbm [shape: f32[64,384], index: 3, kind: output, shape index: {}]
  %s4 = sld [smem:[#allocation0]]
  $region22: #{tpu_custom_call.1} parent=0
    _
  %s6 = ssub.s32 1, %s4
  %s7 = scalar_select 0, %s6, %s4
  $region1: #{tpu_custom_call.1} parent=0
    #allocation2 [shape = 'u8[98304]{0}', space=vmem, size = 0x18000, scoped, tag = 'output window, operand 0, single buffered']
    #allocation3 [shape = 's32[1]{0}', space=sflag, size = 0x4, scoped, tag = 'scoped memory for tpu_custom_call.1']
    %8 = vsyncpa [#allocation3], 0
    // Predicated region
    $region2: #{tpu_custom_call.1} parent=1 // pred_check
      _
    $region3: #{tpu_custom_call.1} parent=1 // pred_check_branch
      %10 = sbr.rel (0) target = $region5
    $region4: #{tpu_custom_call.1} parent=1 // pred_region
      _
    $region5: #{tpu_custom_call.1} parent=1 // pred_fallthru
      _
    // Predicated region
    $region6: #{tpu_custom_call.1} parent=1 // pred_check
      _
    $region7: #{tpu_custom_call.1} parent=1 // pred_check_branch
      %12 = sbr.rel (0) target = $region9
    $region8: #{tpu_custom_call.1} parent=1 // pred_region
      _
    $region9: #{tpu_custom_call.1} parent=1 // pred_fallthru
      _
    // Predicated region
    $region10: #{tpu_custom_call.1} parent=1 // pred_check
      _
    $region11: #{tpu_custom_call.1} parent=1 // pred_check_branch
      %14 = sbr.rel (0) target = $region13
    $region12: #{tpu_custom_call.1} parent=1 // pred_region
      _
    $region13: #{tpu_custom_call.1} parent=1 // pred_fallthru
      _
    %v15 = vld [vmem:[%s0] sm:$0xff]
    %v16 = vld [vmem:[%s0 + $0x8] sm:$0xff]
    %v17 = vld [vmem:[%s0 + $0x10] sm:$0xff]
    %v18 = vld [vmem:[%s0 + $0x18] sm:$0xff]
    %v19 = vld [vmem:[%s0 + $0x20] sm:$0xff]
    %v20 = vld [vmem:[%s0 + $0x28] sm:$0xff]
    %v21 = vld [vmem:[%s0 + $0x30] sm:$0xff]
    %v22 = vld [vmem:[%s0 + $0x38] sm:$0xff]
    %v23 = vld [vmem:[%s1] sm:$0xff]
    %v24 = vld [vmem:[%s1 + $0x8] sm:$0xff]
    %v25 = vld [vmem:[%s1 + $0x10] sm:$0xff]
    %v26 = vld [vmem:[%s1 + $0x18] sm:$0xff]
    %v27 = vld [vmem:[%s1 + $0x20] sm:$0xff]
    %v28 = vld [vmem:[%s1 + $0x28] sm:$0xff]
    %v29 = vld [vmem:[%s2] sm:$0x7]
    %v31 = vlaneseq
    %v32 = vshrl.u32 %v31, 7
    %v33 = vsub.s32 0, %v32
    %v34 = vrot.slane %v29, %v33
    %v35 = vlaneseq
    %v36 = vshrl.u32 %v35, 7
    %v37 = vsub.s32 1, %v36
    %v38 = vrot.slane %v29, %v37
    %v39 = vlaneseq
    %v40 = vshrl.u32 %v39, 7
    %v41 = vsub.s32 2, %v40
    %v42 = vrot.slane %v29, %v41
    %vm46 = vcmask 130048
    %v48 = vsel %vm46, %v15, 0
    %v51 = vsel %vm46, %v16, 0
    %v54 = vsel %vm46, %v17, 0
    %v57 = vsel %vm46, %v18, 0
    %v60 = vsel %vm46, %v19, 0
    %v63 = vsel %vm46, %v20, 0
    %v66 = vsel %vm46, %v21, 0
    %v69 = vsel %vm46, %v22, 0
    %71 = vmatprep.subr.mxu0 0.0
    %72 = vmatpush1.msra.mxu0 0.0
    %73 = vmatprep.subr.mxu0 0.0
    %74 = vmatpush1.msra.mxu0 0.0
    %75 = vmatprep.subr.mxu0 0.0
    %76 = vmatpush1.msra.mxu0 0.0
    %77 = vmatprep.subr.mxu0 0.0
    %78 = vmatpush1.msra.mxu0 0.0
    %79 = vmatprep.subr.mxu0 0.0
    %80 = vmatpush1.msra.mxu0 0.0
    %81 = vmatprep.subr.mxu0 0.0
    %82 = vmatpush1.msra.mxu0 0.0
    %83 = vmatprep.subr.mxu0 0.0
    %84 = vmatpush1.msra.mxu0 0.0
    %85 = vmatprep.subr.mxu0 0.0
    %86 = vmatpush1.msra.mxu0 0.0
    %87 = vmatprep.subr.mxu0 0.0
    %88 = vmatpush1.msra.mxu0 0.0
    %89 = vmatprep.subr.mxu0 0.0
    %90 = vmatpush1.msra.mxu0 0.0
    %91 = vmatprep.subr.mxu0 0.0
    %92 = vmatpush1.msra.mxu0 0.0
    %93 = vmatprep.subr.mxu0 0.0
    %94 = vmatpush1.msra.mxu0 0.0
    %95 = vmatprep.subr.mxu0 0.0
    %96 = vmatpush1.msra.mxu0 0.0
    %97 = vmatprep.subr.mxu0 0.0
    %98 = vmatpush1.msra.mxu0 0.0
    %99 = vmatprep.subr.mxu0 %v27
    %100 = vmatpush1.msra.mxu0 %v26
    %101 = vmatprep.subr.mxu0 %v24
    %102 = vmatpush1.msra.mxu0 %v23
    %103 = vmatprep.subr.mxu0 0.0
    %104 = vmatpush2.msra.mxu0 0.0
    %105 = vmatprep.subr.mxu0 0.0
    %106 = vmatpush2.msra.mxu0 0.0
    %107 = vmatprep.subr.mxu0 0.0
    %108 = vmatpush2.msra.mxu0 0.0
    %109 = vmatprep.subr.mxu0 0.0
    %110 = vmatpush2.msra.mxu0 0.0
    %111 = vmatprep.subr.mxu0 0.0
    %112 = vmatpush2.msra.mxu0 0.0
    %113 = vmatprep.subr.mxu0 0.0
    %114 = vmatpush2.msra.mxu0 0.0
    %115 = vmatprep.subr.mxu0 0.0
    %116 = vmatpush2.msra.mxu0 0.0
    %117 = vmatprep.subr.mxu0 0.0
    %118 = vmatpush2.msra.mxu0 0.0
    %119 = vmatprep.subr.mxu0 0.0
    %120 = vmatpush2.msra.mxu0 0.0
    %121 = vmatprep.subr.mxu0 0.0
    %122 = vmatpush2.msra.mxu0 0.0
    %123 = vmatprep.subr.mxu0 0.0
    %124 = vmatpush2.msra.mxu0 0.0
    %125 = vmatprep.subr.mxu0 0.0
    %126 = vmatpush2.msra.mxu0 0.0
    %127 = vmatprep.subr.mxu0 0.0
    %128 = vmatpush2.msra.mxu0 0.0
    %129 = vmatprep.subr.mxu0 0.0
    %130 = vmatpush2.msra.mxu0 0.0
    %131 = vmatprep.subr.mxu0 0.0
    %132 = vmatpush2.msra.mxu0 0.0
    %133 = vmatprep.subr.mxu0 0.0
    %134 = vmatpush2.msra.mxu0 0.0
    %135 = vmatprep.mubr.f32.mxu0 0.0
    %136 = vmatmul.mubr.f32.gmra.mxu0 %v48
    %v137 = vpop.f32.mrf.mxu0
    %v138 = vadd.f32 %v34, %v137
    %v139 = vpop.f32.mrf.mxu0
    %v140 = vadd.f32 %v38, %v139
    %141 = vmatprep.mubr.f32.mxu0 0.0
    %142 = vmatmul.mubr.f32.gmra.mxu0 %v51
    %v143 = vpop.f32.mrf.mxu0
    %v144 = vadd.f32 %v34, %v143
    %v145 = vpop.f32.mrf.mxu0
    %v146 = vadd.f32 %v38, %v145
    %147 = vmatprep.mubr.f32.mxu0 0.0
    %148 = vmatmul.mubr.f32.gmra.mxu0 %v54
    %v149 = vpop.f32.mrf.mxu0
    %v150 = vadd.f32 %v34, %v149
    %v151 = vpop.f32.mrf.mxu0
    %v152 = vadd.f32 %v38, %v151
    %153 = vmatprep.mubr.f32.mxu0 0.0
    %154 = vmatmul.mubr.f32.gmra.mxu0 %v57
    %v155 = vpop.f32.mrf.mxu0
    %v156 = vadd.f32 %v34, %v155
    %v157 = vpop.f32.mrf.mxu0
    %v158 = vadd.f32 %v38, %v157
    %159 = vmatprep.mubr.f32.mxu0 0.0
    %160 = vmatmul.mubr.f32.gmra.mxu0 %v60
    %v161 = vpop.f32.mrf.mxu0
    %v162 = vadd.f32 %v34, %v161
    %v163 = vpop.f32.mrf.mxu0
    %v164 = vadd.f32 %v38, %v163
    %165 = vmatprep.mubr.f32.mxu0 0.0
    %166 = vmatmul.mubr.f32.gmra.mxu0 %v63
    %v167 = vpop.f32.mrf.mxu0
    %v168 = vadd.f32 %v34, %v167
    %v169 = vpop.f32.mrf.mxu0
    %v170 = vadd.f32 %v38, %v169
    %171 = vmatprep.mubr.f32.mxu0 0.0
    %172 = vmatmul.mubr.f32.gmra.mxu0 %v66
    %v173 = vpop.f32.mrf.mxu0
    %v174 = vadd.f32 %v34, %v173
    %v175 = vpop.f32.mrf.mxu0
    %v176 = vadd.f32 %v38, %v175
    %177 = vmatprep.mubr.f32.mxu0 0.0
    %178 = vmatmul.mubr.f32.gmra.mxu0 %v69
    %v179 = vpop.f32.mrf.mxu0
    %v180 = vadd.f32 %v34, %v179
    %v181 = vpop.f32.mrf.mxu0
    %v182 = vadd.f32 %v38, %v181
    %183 = vdwg.mxu0
    %184 = vmatprep.subr.mxu0 0.0
    %185 = vmatpush1.msra.mxu0 0.0
    %186 = vmatprep.subr.mxu0 0.0
    %187 = vmatpush1.msra.mxu0 0.0
    %188 = vmatprep.subr.mxu0 0.0
    %189 = vmatpush1.msra.mxu0 0.0
    %190 = vmatprep.subr.mxu0 0.0
    %191 = vmatpush1.msra.mxu0 0.0
    %192 = vmatprep.subr.mxu0 0.0
    %193 = vmatpush1.msra.mxu0 0.0
    %194 = vmatprep.subr.mxu0 0.0
    %195 = vmatpush1.msra.mxu0 0.0
    %196 = vmatprep.subr.mxu0 0.0
    %197 = vmatpush1.msra.mxu0 0.0
    %198 = vmatprep.subr.mxu0 0.0
    %199 = vmatpush1.msra.mxu0 0.0
    %200 = vmatprep.subr.mxu0 0.0
    %201 = vmatpush1.msra.mxu0 0.0
    %202 = vmatprep.subr.mxu0 0.0
    %203 = vmatpush1.msra.mxu0 0.0
    %204 = vmatprep.subr.mxu0 0.0
    %205 = vmatpush1.msra.mxu0 0.0
    %206 = vmatprep.subr.mxu0 0.0
    %207 = vmatpush1.msra.mxu0 0.0
    %208 = vmatprep.subr.mxu0 0.0
    %209 = vmatpush1.msra.mxu0 0.0
    %210 = vmatprep.subr.mxu0 0.0
    %211 = vmatpush1.msra.mxu0 0.0
    %212 = vmatprep.subr.mxu0 0.0
    %213 = vmatpush1.msra.mxu0 %v28
    %214 = vmatprep.subr.mxu0 0.0
    %215 = vmatpush1.msra.mxu0 %v25
    %216 = vmatprep.subr.mxu0 0.0
    %217 = vmatpush2.msra.mxu0 0.0
    %218 = vmatprep.subr.mxu0 0.0
    %219 = vmatpush2.msra.mxu0 0.0
    %220 = vmatprep.subr.mxu0 0.0
    %221 = vmatpush2.msra.mxu0 0.0
    %222 = vmatprep.subr.mxu0 0.0
    %223 = vmatpush2.msra.mxu0 0.0
    %224 = vmatprep.subr.mxu0 0.0
    %225 = vmatpush2.msra.mxu0 0.0
    %226 = vmatprep.subr.mxu0 0.0
    %227 = vmatpush2.msra.mxu0 0.0
    %228 = vmatprep.subr.mxu0 0.0
    %229 = vmatpush2.msra.mxu0 0.0
    %230 = vmatprep.subr.mxu0 0.0
    %231 = vmatpush2.msra.mxu0 0.0
    %232 = vmatprep.subr.mxu0 0.0
    %233 = vmatpush2.msra.mxu0 0.0
    %234 = vmatprep.subr.mxu0 0.0
    %235 = vmatpush2.msra.mxu0 0.0
    %236 = vmatprep.subr.mxu0 0.0
    %237 = vmatpush2.msra.mxu0 0.0
    %238 = vmatprep.subr.mxu0 0.0
    %239 = vmatpush2.msra.mxu0 0.0
    %240 = vmatprep.subr.mxu0 0.0
    %241 = vmatpush2.msra.mxu0 0.0
    %242 = vmatprep.subr.mxu0 0.0
    %243 = vmatpush2.msra.mxu0 0.0
    %244 = vmatprep.subr.mxu0 0.0
    %245 = vmatpush2.msra.mxu0 0.0
    %246 = vmatprep.subr.mxu0 0.0
    %247 = vmatpush2.msra.mxu0 0.0
    %248 = vmatprep.mubr.f32.mxu0 0.0
    %249 = vmatmul.mubr.f32.gmra.mxu0 %v48
    %v250 = vpop.f32.mrf.mxu0
    %v251 = vadd.f32 %v42, %v250
    %v252 = vpop.f32.mrf.mxu0
    %253 = vmatprep.mubr.f32.mxu0 0.0
    %254 = vmatmul.mubr.f32.gmra.mxu0 %v51
    %v255 = vpop.f32.mrf.mxu0
    %v256 = vadd.f32 %v42, %v255
    %v257 = vpop.f32.mrf.mxu0
    %258 = vmatprep.mubr.f32.mxu0 0.0
    %259 = vmatmul.mubr.f32.gmra.mxu0 %v54
    %v260 = vpop.f32.mrf.mxu0
    %v261 = vadd.f32 %v42, %v260
    %v262 = vpop.f32.mrf.mxu0
    %263 = vmatprep.mubr.f32.mxu0 0.0
    %264 = vmatmul.mubr.f32.gmra.mxu0 %v57
    %v265 = vpop.f32.mrf.mxu0
    %v266 = vadd.f32 %v42, %v265
    %v267 = vpop.f32.mrf.mxu0
    %268 = vmatprep.mubr.f32.mxu0 0.0
    %269 = vmatmul.mubr.f32.gmra.mxu0 %v60
    %v270 = vpop.f32.mrf.mxu0
    %v271 = vadd.f32 %v42, %v270
    %v272 = vpop.f32.mrf.mxu0
    %273 = vmatprep.mubr.f32.mxu0 0.0
    %274 = vmatmul.mubr.f32.gmra.mxu0 %v63
    %v275 = vpop.f32.mrf.mxu0
    %v276 = vadd.f32 %v42, %v275
    %v277 = vpop.f32.mrf.mxu0
    %278 = vmatprep.mubr.f32.mxu0 0.0
    %279 = vmatmul.mubr.f32.gmra.mxu0 %v66
    %v280 = vpop.f32.mrf.mxu0
    %v281 = vadd.f32 %v42, %v280
    %v282 = vpop.f32.mrf.mxu0
    %283 = vmatprep.mubr.f32.mxu0 0.0
    %284 = vmatmul.mubr.f32.gmra.mxu0 %v69
    %v285 = vpop.f32.mrf.mxu0
    %v286 = vadd.f32 %v42, %v285
    %v287 = vpop.f32.mrf.mxu0
    %288 = vdwg.mxu0
    %289 = vst [vmem:[#allocation2] sm:$0xff] %v138
    %290 = vst [vmem:[#allocation2 + $0x8] sm:$0xff] %v140
    %291 = vst [vmem:[#allocation2 + $0x10] sm:$0xff] %v251
    %292 = vst [vmem:[#allocation2 + $0x18] sm:$0xff] %v144
    %293 = vst [vmem:[#allocation2 + $0x20] sm:$0xff] %v146
    %294 = vst [vmem:[#allocation2 + $0x28] sm:$0xff] %v256
    %295 = vst [vmem:[#allocation2 + $0x30] sm:$0xff] %v150
    %296 = vst [vmem:[#allocation2 + $0x38] sm:$0xff] %v152
    %297 = vst [vmem:[#allocation2 + $0x40] sm:$0xff] %v261
    %298 = vst [vmem:[#allocation2 + $0x48] sm:$0xff] %v156
    %299 = vst [vmem:[#allocation2 + $0x50] sm:$0xff] %v158
    %300 = vst [vmem:[#allocation2 + $0x58] sm:$0xff] %v266
    %301 = vst [vmem:[#allocation2 + $0x60] sm:$0xff] %v162
    %302 = vst [vmem:[#allocation2 + $0x68] sm:$0xff] %v164
    %303 = vst [vmem:[#allocation2 + $0x70] sm:$0xff] %v271
    %304 = vst [vmem:[#allocation2 + $0x78] sm:$0xff] %v168
    %305 = vst [vmem:[#allocation2 + $0x80] sm:$0xff] %v170
    %306 = vst [vmem:[#allocation2 + $0x88] sm:$0xff] %v276
    %307 = vst [vmem:[#allocation2 + $0x90] sm:$0xff] %v174
    %308 = vst [vmem:[#allocation2 + $0x98] sm:$0xff] %v176
    %309 = vst [vmem:[#allocation2 + $0xa0] sm:$0xff] %v281
    %310 = vst [vmem:[#allocation2 + $0xa8] sm:$0xff] %v180
    %311 = vst [vmem:[#allocation2 + $0xb0] sm:$0xff] %v182
    %312 = vst [vmem:[#allocation2 + $0xb8] sm:$0xff] %v286
    // Predicated region
    $region14: #{tpu_custom_call.1} parent=1 // pred_check
      _
    $region15: #{tpu_custom_call.1} parent=1 // pred_check_branch
      %314 = sbr.rel (0) target = $region17
    $region16: #{tpu_custom_call.1} parent=1 // pred_region
      %s316 = ssub.s32 3072, 3072
      %317 = vsyncadd [#allocation3], %s316
      %s318 = sshll.u32 [#allocation2], 4
      %s319 = int_to_ptr.vmem [resolvable:$true] %s318
      %324 = dma.vmem_to_hbm [thread:$0]  %s319, 3072, %s3, [#allocation3], 384, 384, 24
    $region17: #{tpu_custom_call.1} parent=1 // pred_fallthru
      _
    // Predicated region
    $region18: #{tpu_custom_call.1} parent=1 // pred_check
      _
    $region19: #{tpu_custom_call.1} parent=1 // pred_check_branch
      %326 = sbr.rel (0) target = $region21
    $region20: #{tpu_custom_call.1} parent=1 // pred_region
      %327 = dma.done [#allocation3], 3072
    $region21: #{tpu_custom_call.1} parent=1 // pred_fallthru
      _
    %328 = vsyncpa [#allocation3], 1

</llo_original>
